<compile_context>
chip_gen: v7x
topology: tpu7x:2x2x1
jax: 0.10.0
libtpu: 0.0.40
codegen_flags: <defaults>
</compile_context>

<pallas_src>
import functools

import jax
import jax.numpy as jnp
from jax import lax
from jax.experimental import pallas as pl
from jax.experimental.pallas import tpu as pltpu


def _maxpool_kernel(x_ref, o_ref, rmt_ref, *, kernel_size, stride, padding,
                    out_h, out_w, fill):
    """One grid step == one tile of `bc` independent (batch*channel) planes.

    x_ref   : (bc, H, W)             un-padded input tile (W on lanes)
    o_ref   : (bc, out_h, out_w)     pooled output tile
    rmt_ref : (bc, W + 2*pad, out_h) transposed row-max scratch (W on sublanes)
    """
    bc, h, w = x_ref.shape
    k, s, p = kernel_size, stride, padding
    dt = x_ref.dtype

    # ---- Stage 1: max over kernel rows (kh), straight from the input. ------
    # Each tap is a sublane-strided pick; H padding is handled with static
    # valid output-row subranges (no padded copy of the input is ever built).
    # Out-of-range rows of a boundary tap contribute the identity `fill`
    # through tiny fill-row concats (at most `padding` rows per side).
    rm = None
    for kh in range(k):
        o_lo = max(0, -((kh - p) // s))                  # ceil((p - kh) / s)
        o_hi = min(out_h - 1, (h - 1 + p - kh) // s)     # floor((h-1+p-kh)/s)
        if o_hi < o_lo:
            continue
        n = o_hi - o_lo + 1
        row0 = o_lo * s + kh - p                         # always >= 0
        idx = pl.ds(row0, n, stride=s) if s > 1 else pl.ds(row0, n)
        tap = x_ref[:, idx, :]                           # (bc, n, w)
        if n < out_h:
            parts = []
            if o_lo > 0:
                parts.append(jnp.full((bc, o_lo, w), fill, dt))
            parts.append(tap)
            if o_hi < out_h - 1:
                parts.append(jnp.full((bc, out_h - 1 - o_hi, w), fill, dt))
            tap = jnp.concatenate(parts, axis=1)
        rm = tap if rm is None else jnp.maximum(rm, tap)
    assert rm is not None

    # ---- Stage 2: max over kernel columns (kw). -----------------------------
    # Swap W onto sublanes (XLU transpose; free slot in a memory-bound kernel)
    # so the kw taps are cheap sublane-strided reads.  Only the left/right `p`
    # columns of the small scratch are filled with the identity.
    rmt = jnp.swapaxes(rm, 1, 2)                         # (bc, w, out_h)
    if p > 0:
        rmt_ref[:, 0:p, :] = jnp.full((bc, p, out_h), fill, dt)
        rmt_ref[:, p + w:p + w + p, :] = jnp.full((bc, p, out_h), fill, dt)
    rmt_ref[:, p:p + w, :] = rmt
    # TODO(synk): keep this stage register-resident (strided lax.slice on the
    # value) for tiny tiles to drop the scratch store+reload on v5e.

    idx0 = pl.ds(0, out_w, stride=s) if s > 1 else pl.ds(0, out_w)
    acc = rmt_ref[:, idx0, :]                            # (bc, out_w, out_h)
    for kw in range(1, k):
        idx = pl.ds(kw, out_w, stride=s) if s > 1 else pl.ds(kw, out_w)
        acc = jnp.maximum(acc, rmt_ref[:, idx, :])

    o_ref[...] = jnp.swapaxes(acc, 1, 2).astype(o_ref.dtype)


def _vmem_info():
    """Generation-aware VMEM capacity (falls back to a conservative 64 MiB)."""
    default = 64 * 1024 * 1024
    try:
        info = pltpu.get_tpu_info()
        cap = int(getattr(info, "vmem_capacity_bytes", default))
        return cap if cap > 0 else default
    except Exception:
        return default


def max_pool2d_pallas(x_nchw, kernel_size, stride, padding):
    """MaxPool2d with PyTorch semantics (floor output size, -inf padding)."""
    n, c, h, w = x_nchw.shape
    k, s, p = int(kernel_size), int(stride), int(padding)
    assert p <= k // 2, "PyTorch MaxPool2d requires padding <= kernel_size // 2"
    out_h = (h + 2 * p - k) // s + 1
    out_w = (w + 2 * p - k) // s + 1
    assert out_h >= 1 and out_w >= 1, "pooling window larger than padded input"

    dtype = x_nchw.dtype
    if jnp.issubdtype(dtype, jnp.floating):
        fill = float("-inf")
    else:
        fill = int(jnp.iinfo(dtype).min)

    # Free layout change: fold N and C (pooling is independent across both).
    nc = n * c
    x = x_nchw.reshape(nc, h, w)

    # ---- Tile size over the fused N*C axis, sized from real VMEM. ----------
    itemsize = jnp.dtype(dtype).itemsize
    w_pad = w + 2 * p
    # Double-buffered input/output blocks + transposed row-max scratch.
    per_bc_bytes = itemsize * (2 * h * w + 2 * out_h * out_w + w_pad * out_h)

    vmem_cap = _vmem_info()
    vmem_limit = min(int(vmem_cap * 0.75), 112 * 1024 * 1024)
    tile_budget = int(vmem_cap * 0.55)

    max_fit = max(1, tile_budget // per_bc_bytes)
    # Ensure >= 2 grid steps whenever possible so both v7x TensorCores get work.
    target = nc if nc < 2 else pl.cdiv(nc, 2)
    bc_tile = int(max(1, min(nc, max_fit, target)))
    # TODO(synk): if bc_tile == 1 still exceeds VMEM (huge H*W), tile output
    # rows with a (kernel_size - stride) halo instead.

    kernel = functools.partial(
        _maxpool_kernel,
        kernel_size=k, stride=s, padding=p,
        out_h=out_h, out_w=out_w, fill=fill,
    )

    out = pl.pallas_call(
        kernel,
        out_shape=jax.ShapeDtypeStruct((nc, out_h, out_w), dtype),
        grid=(pl.cdiv(nc, bc_tile),),
        in_specs=[pl.BlockSpec((bc_tile, h, w), lambda i: (i, 0, 0))],
        out_specs=pl.BlockSpec((bc_tile, out_h, out_w), lambda i: (i, 0, 0)),
        scratch_shapes=[pltpu.VMEM((bc_tile, w_pad, out_h), dtype)],
        compiler_params=pltpu.CompilerParams(
            dimension_semantics=("parallel",),
            vmem_limit_bytes=vmem_limit),
    )(x)

    # Free reshape back to the PyTorch NCHW convention.
    return out.reshape(n, c, out_h, out_w)


class Pooling:
    """JAX/Pallas port of the PyTorch `Pooling` module."""

    def __init__(self, parameters):
        self.parameters = parameters

    def forward(self, input_data, feedforward_flag=True, recurrent_flag=True,
                topdown_flag=True, data_size=None):
        x = input_data[0]
        output = max_pool2d_pallas(
            x,
            kernel_size=self.parameters['kernel_size'],
            stride=self.parameters['stride'],
            padding=self.parameters['padding'],
        )
        return (output, None, None)

    def output_size(self, input_size):
        width_height = (input_size[1] + 2 * self.parameters['padding']
                        - self.parameters['kernel_size']) / self.parameters['stride'] + 1
        width_height = int(width_height)
        return [input_size[0], width_height, width_height]

    @staticmethod
    def __name__():
        return 'Pooling'


if __name__ == "__main__":
    params = {'kernel_size': 3, 'stride': 2, 'padding': 1}
    pooling = Pooling(params)

    key = jax.random.PRNGKey(0)
    # NCHW input, matching the PyTorch module's convention.
    x = jax.random.normal(key, (2, 4, 16, 16), dtype=jnp.float32)

    out, _, _ = pooling.forward([x])
    out = jax.block_until_ready(out)

    # Reference max-pool via lax.reduce_window (same floor/-inf-pad semantics).
    ref = lax.reduce_window(
        x, -jnp.inf, lax.max,
        window_dimensions=(1, 1, params['kernel_size'], params['kernel_size']),
        window_strides=(1, 1, params['stride'], params['stride']),
        padding=((0, 0), (0, 0),
                 (params['padding'], params['padding']),
                 (params['padding'], params['padding'])),
    )

    expected_shape = tuple([x.shape[0]] + pooling.output_size([x.shape[1], x.shape[2]]))
    assert out.shape == expected_shape, (out.shape, expected_shape)
    assert out.dtype == x.dtype
    assert jnp.allclose(out, ref), "Pallas max-pool mismatch vs reference"

    print("KERNEL_OK")
</pallas_src>

<mosaic_0001>
module attributes {stable_mosaic.version = 11 : i64} {
  func.func @_maxpool_kernel(%arg0: i32, %arg1: memref<4x16x16xf32, #tpu.memory_space<vmem>>, %arg2: memref<4x8x8xf32, #tpu.memory_space<vmem>>, %arg3: memref<4x18x8xf32, #tpu.memory_space<vmem>>) attributes {dimension_semantics = [#tpu.dimension_semantics<parallel>], iteration_bounds = array<i64: 2>, scalar_prefetch = 0 : i64, scratch_operands = 1 : i64, tpu.core_type = #tpu.core_type<tc>, window_params = [{transform_indices = @transform_0, window_bounds = array<i64: 4, 16, 16>}, {transform_indices = @transform_1, window_bounds = array<i64: 4, 8, 8>}]} {
    %c0 = arith.constant 0 : index
    %c1 = arith.constant 1 : index
    %c0_0 = arith.constant 0 : index
    %0 = tpu.strided_load %arg1[%c0, %c1, %c0_0] {strides = array<i32: 1, 2, 1>} : memref<4x16x16xf32, #tpu.memory_space<vmem>>, vector<4x7x16xf32>
    %cst = arith.constant 0xFF800000 : f32
    %1 = vector.broadcast %cst : f32 to vector<4x1x16xf32>
    %2 = tpu.concatenate %1, %0 in 1 : vector<4x1x16xf32>, vector<4x7x16xf32> -> vector<4x8x16xf32>
    %c0_1 = arith.constant 0 : index
    %c0_2 = arith.constant 0 : index
    %c0_3 = arith.constant 0 : index
    %3 = tpu.strided_load %arg1[%c0_1, %c0_2, %c0_3] {strides = array<i32: 1, 2, 1>} : memref<4x16x16xf32, #tpu.memory_space<vmem>>, vector<4x8x16xf32>
    %4 = arith.maximumf %2, %3 : vector<4x8x16xf32>
    %c0_4 = arith.constant 0 : index
    %c1_5 = arith.constant 1 : index
    %c0_6 = arith.constant 0 : index
    %5 = tpu.strided_load %arg1[%c0_4, %c1_5, %c0_6] {strides = array<i32: 1, 2, 1>} : memref<4x16x16xf32, #tpu.memory_space<vmem>>, vector<4x8x16xf32>
    %6 = arith.maximumf %4, %5 : vector<4x8x16xf32>
    %7 = tpu.transpose %6, [0, 2, 1] : vector<4x8x16xf32> -> vector<4x16x8xf32>
    %cst_7 = arith.constant 0xFF800000 : f32
    %8 = vector.broadcast %cst_7 : f32 to vector<4x1x8xf32>
    %c0_8 = arith.constant 0 : index
    %c0_9 = arith.constant 0 : index
    %c0_10 = arith.constant 0 : index
    %9 = vector.load %arg3[%c0_8, %c0_9, %c0_10] : memref<4x18x8xf32, #tpu.memory_space<vmem>>, vector<4x1x8xf32>
    tpu.vector_store %arg3[%c0_8, %c0_9, %c0_10], %8 {strides = array<i32>} : memref<4x18x8xf32, #tpu.memory_space<vmem>>, vector<4x1x8xf32>,
    %cst_11 = arith.constant 0xFF800000 : f32
    %10 = vector.broadcast %cst_11 : f32 to vector<4x1x8xf32>
    %c0_12 = arith.constant 0 : index
    %c17 = arith.constant 17 : index
    %c0_13 = arith.constant 0 : index
    %11 = vector.load %arg3[%c0_12, %c17, %c0_13] : memref<4x18x8xf32, #tpu.memory_space<vmem>>, vector<4x1x8xf32>
    tpu.vector_store %arg3[%c0_12, %c17, %c0_13], %10 {strides = array<i32>} : memref<4x18x8xf32, #tpu.memory_space<vmem>>, vector<4x1x8xf32>,
    %c0_14 = arith.constant 0 : index
    %c1_15 = arith.constant 1 : index
    %c0_16 = arith.constant 0 : index
    %12 = vector.load %arg3[%c0_14, %c1_15, %c0_16] : memref<4x18x8xf32, #tpu.memory_space<vmem>>, vector<4x16x8xf32>
    tpu.vector_store %arg3[%c0_14, %c1_15, %c0_16], %7 {strides = array<i32>} : memref<4x18x8xf32, #tpu.memory_space<vmem>>, vector<4x16x8xf32>,
    %c0_17 = arith.constant 0 : index
    %c0_18 = arith.constant 0 : index
    %c0_19 = arith.constant 0 : index
    %13 = tpu.strided_load %arg3[%c0_17, %c0_18, %c0_19] {strides = array<i32: 1, 2, 1>} : memref<4x18x8xf32, #tpu.memory_space<vmem>>, vector<4x8x8xf32>
    %c0_20 = arith.constant 0 : index
    %c1_21 = arith.constant 1 : index
    %c0_22 = arith.constant 0 : index
    %14 = tpu.strided_load %arg3[%c0_20, %c1_21, %c0_22] {strides = array<i32: 1, 2, 1>} : memref<4x18x8xf32, #tpu.memory_space<vmem>>, vector<4x8x8xf32>
    %15 = arith.maximumf %13, %14 : vector<4x8x8xf32>
    %c0_23 = arith.constant 0 : index
    %c2 = arith.constant 2 : index
    %c0_24 = arith.constant 0 : index
    %16 = tpu.strided_load %arg3[%c0_23, %c2, %c0_24] {strides = array<i32: 1, 2, 1>} : memref<4x18x8xf32, #tpu.memory_space<vmem>>, vector<4x8x8xf32>
    %17 = arith.maximumf %15, %16 : vector<4x8x8xf32>
    %18 = tpu.transpose %17, [0, 2, 1] : vector<4x8x8xf32> -> vector<4x8x8xf32>
    %c0_25 = arith.constant 0 : index
    %c0_26 = arith.constant 0 : index
    %c0_27 = arith.constant 0 : index
    %19 = vector.load %arg2[%c0_25, %c0_26, %c0_27] : memref<4x8x8xf32, #tpu.memory_space<vmem>>, vector<4x8x8xf32>
    tpu.vector_store %arg2[%c0_25, %c0_26, %c0_27], %18 {strides = array<i32>} : memref<4x8x8xf32, #tpu.memory_space<vmem>>, vector<4x8x8xf32>,
    return
  }
  func.func @transform_0(%arg0: i32) -> (i32, i32, i32) {
    %c0_i32 = arith.constant 0 : i32
    %c0_i32_0 = arith.constant 0 : i32
    %c0_i32_1 = arith.constant 0 : i32
    return %arg0, %c0_i32, %c0_i32_0 : i32, i32, i32
  }
  func.func @transform_1(%arg0: i32) -> (i32, i32, i32) {
    %c0_i32 = arith.constant 0 : i32
    %c0_i32_0 = arith.constant 0 : i32
    %c0_i32_1 = arith.constant 0 : i32
    return %arg0, %c0_i32, %c0_i32_0 : i32, i32, i32
  }
}

</mosaic_0001>

<llo_original>
// kernel: tpu_custom_call.1
$region0: #{tpu_custom_call.1}
  #allocation0 [shape = 'u32[]', space=smem, size = 0x4, offset = 0x4, fixed_abs, tag = 'smem constant byte address 0x4 - core index']
  #allocation1 [shape = 'u32[144,128]{1,0:T(1,128)}', space=vmem, size = 0x12000, scoped, tag = 'internal scratch']
  #allocation2 [shape = 'f32[4,18,8]{2,1,0:T(8,128)}', space=vmem, size = 0xc000, scoped, tag = 'scratch operand']
  %s0 = inlined_call_operand.hbm [shape: f32[8,16,16], index: 0, kind: input, shape index: {}]
  %s1 = inlined_call_operand.hbm [shape: f32[8,8,8], index: 1, kind: output, shape index: {}]
  %s2 = sld [smem:[#allocation0]]
  $region41: #{tpu_custom_call.1} parent=0
    _
  %s4 = ssub.s32 1, %s2
  %s5 = scalar_select 0, %s4, %s2
  $region1: #{tpu_custom_call.1} parent=0
    #allocation3 [shape = 'u8[65536]{0}', space=vmem, size = 0x10000, scoped, tag = 'input window, operand 0']
    #allocation4 [shape = 's32[2]{0}', space=sflag, size = 0x8, scoped, tag = 'scoped memory for tpu_custom_call.1']
    #allocation5 [shape = 's32[2]{0}', space=sflag, size = 0x8, scoped, tag = 'scoped memory for tpu_custom_call.1']
    #allocation6 [shape = 'u8[32768]{0}', space=vmem, size = 0x8000, scoped, tag = 'output window, operand 0']
    %6 = vsyncpa [#allocation4], 0
    %s7 = scalar_lea.sflag [#allocation4], 1
    %8 = vsyncpa %s7, 0
    %9 = vsyncpa [#allocation5], 0
    %s10 = scalar_lea.sflag [#allocation5], 1
    %11 = vsyncpa %s10, 0
    loop: start=0, step=1, limit=4
    $region2: #{tpu_custom_call.1} parent=1 // loop_pre_header
      _
    $region3: #{tpu_custom_call.1} parent=1 // loop_header
      %s13 = sphi 0, %s17
      %p14 = scmp.ge.s32.totalorder %s13, 4
      %s23 = sphi 0, %s25
      %s26 = sphi 0, %s23
      %s27 = sphi 0, %s26
      %s43 = sphi 0, %s27
      %s49 = sphi 0, %s51
      %s52 = sphi 0, %s49
      %s53 = sphi 0, %s52
      %s69 = sphi 0, %s53
    $region4: #{tpu_custom_call.1} parent=1 // loop_header_branch
      %16 = sbr.rel (%p14) target = $region8
    $region5: #{tpu_custom_call.1} parent=1 // loop_body
      %s18 = ssub.s32 %s13, 1
      %s19 = ssub.s32 %s13, 2
      %s20 = sadd.s32 %s13, 1
      %s21 = ssub.s32 %s13, %s20
      %p22 = scmp.eq.s32.totalorder %s21, 0
      %s24 = sadd.s32 %s23, 1
      %s25 = scalar_select %p22, %s23, %s24
      %p28 = pneg %p22
      %p29 = scmp.eq.s32.totalorder %s13, 1
      %p30 = por %p28, %p29
      %p31 = scmp.ne.s32.totalorder %s23, %s26
      %p32 = scmp.eq.s32.totalorder %s13, 0
      %p33 = por %p31, %p32
      %p34 = scmp.ne.s32.totalorder %s23, %s26
      %p35 = scmp.eq.s32.totalorder %s18, 1
      %p36 = por %p34, %p35
      %p37 = scmp.ne.s32.totalorder %s26, %s27
      %p38 = scmp.eq.s32.totalorder %s18, 0
      %p39 = por %p37, %p38
      %p40 = scmp.ne.s32.totalorder %s26, %s27
      %p41 = scmp.eq.s32.totalorder %s19, 1
      %p42 = por %p40, %p41
      %p44 = scmp.ne.s32.totalorder %s27, %s43
      %p45 = scmp.eq.s32.totalorder %s19, 0
      %p46 = por %p44, %p45
      %s47 = ssub.s32 %s13, %s20
      %p48 = scmp.eq.s32.totalorder %s47, 0
      %s50 = sadd.s32 %s49, 1
      %s51 = scalar_select %p48, %s49, %s50
      %p54 = pneg %p48
      %p55 = scmp.eq.s32.totalorder %s13, 1
      %p56 = por %p54, %p55
      %p57 = scmp.ne.s32.totalorder %s49, %s52
      %p58 = scmp.eq.s32.totalorder %s13, 0
      %p59 = por %p57, %p58
      %p60 = scmp.ne.s32.totalorder %s49, %s52
      %p61 = scmp.eq.s32.totalorder %s18, 1
      %p62 = por %p60, %p61
      %p63 = scmp.ne.s32.totalorder %s52, %s53
      %p64 = scmp.eq.s32.totalorder %s18, 0
      %p65 = por %p63, %p64
      %p66 = scmp.ne.s32.totalorder %s52, %s53
      %p67 = scmp.eq.s32.totalorder %s19, 1
      %p68 = por %p66, %p67
      %p70 = scmp.ne.s32.totalorder %s53, %s69
      %p71 = scmp.eq.s32.totalorder %s19, 0
      %p72 = por %p70, %p71
      %p73 = scmp.le.s32.totalorder 1, %s13
      %p74 = scmp.lt.s32.totalorder %s13, 3
      %p75 = pnand %p73, %p74
      %p76 = pneg %p75
      // Predicated region
      $region9: #{tpu_custom_call.1} parent=5 // pred_check
        _
      $region10: #{tpu_custom_call.1} parent=5 // pred_check_branch
        %78 = sbr.rel (%p75) target = $region12
      $region11: #{tpu_custom_call.1} parent=5 // pred_region
        %s79 = ssub.s32 %s13, 1
      $region12: #{tpu_custom_call.1} parent=5 // pred_fallthru
        _
      %p80 = scmp.lt.s32.totalorder %s13, 2
      // Predicated region
      $region13: #{tpu_custom_call.1} parent=5 // pred_check
        %p81 = pneg %p80
      $region14: #{tpu_custom_call.1} parent=5 // pred_check_branch
        %83 = sbr.rel (%p81) target = $region16
      $region15: #{tpu_custom_call.1} parent=5 // pred_region
        // Predicated region
        $region17: #{tpu_custom_call.1} parent=15 // pred_check
          %p84 = pneg %p33
        $region18: #{tpu_custom_call.1} parent=15 // pred_check_branch
          %86 = sbr.rel (%p84) target = $region20
        $region19: #{tpu_custom_call.1} parent=15 // pred_region
          %s87 = sand.u32 %s23, 1
          %s88 = scalar_lea.sflag [#allocation4], %s87
          %s89 = sand.u32 %s23, 1
          %s90 = smul.addr %s89, 64
          %s91 = scalar_lea.vmem [#allocation3], %s90
          %s92 = smul.u32 4, %s13
          %s94 = ssub.s32 1024, 1024
          %95 = vsyncadd %s88, %s94
          %s96 = smul.addr %s92, 2
          %s97 = smul.addr %s96, 128
          %s98 = scalar_lea.hbm %s0, %s97
          %s99 = sshll.u32 %s91, 4
          %s100 = int_to_ptr.vmem [resolvable:$true] %s99
          %105 = dma.hbm_to_vmem [thread:$0]  %s98, 1024, %s100, %s88, 128, 128, 8
        $region20: #{tpu_custom_call.1} parent=15 // pred_fallthru
          _
      $region16: #{tpu_custom_call.1} parent=5 // pred_fallthru
        _
      %p106 = scmp.le.s32.totalorder 1, %s13
      %p107 = scmp.lt.s32.totalorder %s13, 3
      %p108 = pnand %p106, %p107
      %p109 = pneg %p108
      // Predicated region
      $region21: #{tpu_custom_call.1} parent=5 // pred_check
        _
      $region22: #{tpu_custom_call.1} parent=5 // pred_check_branch
        %111 = sbr.rel (%p108) target = $region24
      $region23: #{tpu_custom_call.1} parent=5 // pred_region
        %s112 = ssub.s32 %s13, 1
        %s113 = sand.u32 %s26, 1
        %s114 = scalar_lea.sflag [#allocation4], %s113
        %s115 = sand.u32 %s26, 1
        %s116 = smul.addr %s115, 64
        %s117 = scalar_lea.vmem [#allocation3], %s116
        // Predicated region
        $region25: #{tpu_custom_call.1} parent=23 // pred_check
          %p118 = pneg %p39
        $region26: #{tpu_custom_call.1} parent=23 // pred_check_branch
          %120 = sbr.rel (%p118) target = $region28
        $region27: #{tpu_custom_call.1} parent=23 // pred_region
          %121 = dma.done %s114, 1024
        $region28: #{tpu_custom_call.1} parent=23 // pred_fallthru
          _
        %s122 = sand.u32 %s26, 1
        %s123 = scalar_lea.sflag [#allocation4], %s122
        %s124 = sand.u32 %s26, 1
        %s125 = smul.addr %s124, 64
        %s126 = scalar_lea.vmem [#allocation3], %s125
        %p127 = pneg %p39
        %p128 = pneg %p36
        %p129 = pneg %p65
        %p130 = pneg %p62
        %s131 = sand.u32 %s52, 1
        %s132 = scalar_lea.sflag [#allocation5], %s131
        %s133 = sand.u32 %s52, 1
        %s134 = smul.addr %s133, 32
        %s135 = scalar_lea.vmem [#allocation6], %s134
        %s136 = smul.u32 4, %s18
        %s137 = smul.u32 4, %s18
        %s138 = scalar_lea.vmem %s117, 1 [#allocation3]
        %v139 = vld [vmem:[%s138] ss:$2 sm:$0x7f]
        %s140 = scalar_lea.vmem %s117, 17 [#allocation3]
        %v141 = vld [vmem:[%s140] ss:$2 sm:$0x7f]
        %s142 = scalar_lea.vmem %s117, 33 [#allocation3]
        %v143 = vld [vmem:[%s142] ss:$2 sm:$0x7f]
        %s144 = scalar_lea.vmem %s117, 49 [#allocation3]
        %v145 = vld [vmem:[%s144] ss:$2 sm:$0x7f]
        %v150 = vrot.slane %v139, 7
        %v151 = vrot.slane %v141, 7
        %v152 = vrot.slane %v143, 7
        %v153 = vrot.slane %v145, 7
        %vm158 = vcmask 1040384
        %v159 = vsel %vm158, -inf, %v150
        %v160 = vsel %vm158, -inf, %v151
        %v161 = vsel %vm158, -inf, %v152
        %v162 = vsel %vm158, -inf, %v153
        %v163 = vld [vmem:[%s117] ss:$2 sm:$0xff]
        %s164 = scalar_lea.vmem %s117, 16 [#allocation3]
        %v165 = vld [vmem:[%s164] ss:$2 sm:$0xff]
        %s166 = scalar_lea.vmem %s117, 32 [#allocation3]
        %v167 = vld [vmem:[%s166] ss:$2 sm:$0xff]
        %s168 = scalar_lea.vmem %s117, 48 [#allocation3]
        %v169 = vld [vmem:[%s168] ss:$2 sm:$0xff]
        %v170 = vmax.f32 %v159, %v163
        %v171 = vmax.f32 %v160, %v165
        %v172 = vmax.f32 %v161, %v167
        %v173 = vmax.f32 %v162, %v169
        %v174 = vld [vmem:[%s138] ss:$2 sm:$0xff]
        %v175 = vld [vmem:[%s140] ss:$2 sm:$0xff]
        %v176 = vld [vmem:[%s142] ss:$2 sm:$0xff]
        %v177 = vld [vmem:[%s144] ss:$2 sm:$0xff]
        %v178 = vmax.f32 %v170, %v174
        %v179 = vmax.f32 %v171, %v175
        %v180 = vmax.f32 %v172, %v176
        %v181 = vmax.f32 %v173, %v177
        %182 = vxpose.xlu0.b32.start [1/16] %v178, 128
        %183 = vxpose.xlu0.b32.cont [2/16] 0.0, 128
        %184 = vxpose.xlu0.b32.cont [3/16] 0.0, 128
        %185 = vxpose.xlu0.b32.cont [4/16] 0.0, 128
        %186 = vxpose.xlu0.b32.cont [5/16] 0.0, 128
        %187 = vxpose.xlu0.b32.cont [6/16] 0.0, 128
        %188 = vxpose.xlu0.b32.cont [7/16] 0.0, 128
        %189 = vxpose.xlu0.b32.cont [8/16] 0.0, 128
        %190 = vxpose.xlu0.b32.cont [9/16] 0.0, 128
        %191 = vxpose.xlu0.b32.cont [10/16] 0.0, 128
        %192 = vxpose.xlu0.b32.cont [11/16] 0.0, 128
        %193 = vxpose.xlu0.b32.cont [12/16] 0.0, 128
        %194 = vxpose.xlu0.b32.cont [13/16] 0.0, 128
        %195 = vxpose.xlu0.b32.cont [14/16] 0.0, 128
        %196 = vxpose.xlu0.b32.cont [15/16] 0.0, 128
        %197 = vxpose.xlu0.b32.end [16/16] 0.0, 128
        %v198 = vpop.trf.xlu0
        %v199 = vpop.trf.xlu0
        %v200 = vpop.trf.xlu0
        %v201 = vpop.trf.xlu0
        %v202 = vpop.trf.xlu0
        %v203 = vpop.trf.xlu0
        %v204 = vpop.trf.xlu0
        %v205 = vpop.trf.xlu0
        %v206 = vpop.trf.xlu0
        %v207 = vpop.trf.xlu0
        %v208 = vpop.trf.xlu0
        %v209 = vpop.trf.xlu0
        %v210 = vpop.trf.xlu0
        %v211 = vpop.trf.xlu0
        %v212 = vpop.trf.xlu0
        %v213 = vpop.trf.xlu0
        %214 = vxpose.xlu0.b32.start [1/16] %v179, 128
        %215 = vxpose.xlu0.b32.cont [2/16] 0.0, 128
        %216 = vxpose.xlu0.b32.cont [3/16] 0.0, 128
        %217 = vxpose.xlu0.b32.cont [4/16] 0.0, 128
        %218 = vxpose.xlu0.b32.cont [5/16] 0.0, 128
        %219 = vxpose.xlu0.b32.cont [6/16] 0.0, 128
        %220 = vxpose.xlu0.b32.cont [7/16] 0.0, 128
        %221 = vxpose.xlu0.b32.cont [8/16] 0.0, 128
        %222 = vxpose.xlu0.b32.cont [9/16] 0.0, 128
        %223 = vxpose.xlu0.b32.cont [10/16] 0.0, 128
        %224 = vxpose.xlu0.b32.cont [11/16] 0.0, 128
        %225 = vxpose.xlu0.b32.cont [12/16] 0.0, 128
        %226 = vxpose.xlu0.b32.cont [13/16] 0.0, 128
        %227 = vxpose.xlu0.b32.cont [14/16] 0.0, 128
        %228 = vxpose.xlu0.b32.cont [15/16] 0.0, 128
        %229 = vxpose.xlu0.b32.end [16/16] 0.0, 128
        %v230 = vpop.trf.xlu0
        %v231 = vpop.trf.xlu0
        %v232 = vpop.trf.xlu0
        %v233 = vpop.trf.xlu0
        %v234 = vpop.trf.xlu0
        %v235 = vpop.trf.xlu0
        %v236 = vpop.trf.xlu0
        %v237 = vpop.trf.xlu0
        %v238 = vpop.trf.xlu0
        %v239 = vpop.trf.xlu0
        %v240 = vpop.trf.xlu0
        %v241 = vpop.trf.xlu0
        %v242 = vpop.trf.xlu0
        %v243 = vpop.trf.xlu0
        %v244 = vpop.trf.xlu0
        %v245 = vpop.trf.xlu0
        %246 = vxpose.xlu0.b32.start [1/16] %v180, 128
        %247 = vxpose.xlu0.b32.cont [2/16] 0.0, 128
        %248 = vxpose.xlu0.b32.cont [3/16] 0.0, 128
        %249 = vxpose.xlu0.b32.cont [4/16] 0.0, 128
        %250 = vxpose.xlu0.b32.cont [5/16] 0.0, 128
        %251 = vxpose.xlu0.b32.cont [6/16] 0.0, 128
        %252 = vxpose.xlu0.b32.cont [7/16] 0.0, 128
        %253 = vxpose.xlu0.b32.cont [8/16] 0.0, 128
        %254 = vxpose.xlu0.b32.cont [9/16] 0.0, 128
        %255 = vxpose.xlu0.b32.cont [10/16] 0.0, 128
        %256 = vxpose.xlu0.b32.cont [11/16] 0.0, 128
        %257 = vxpose.xlu0.b32.cont [12/16] 0.0, 128
        %258 = vxpose.xlu0.b32.cont [13/16] 0.0, 128
        %259 = vxpose.xlu0.b32.cont [14/16] 0.0, 128
        %260 = vxpose.xlu0.b32.cont [15/16] 0.0, 128
        %261 = vxpose.xlu0.b32.end [16/16] 0.0, 128
        %v262 = vpop.trf.xlu0
        %v263 = vpop.trf.xlu0
        %v264 = vpop.trf.xlu0
        %v265 = vpop.trf.xlu0
        %v266 = vpop.trf.xlu0
        %v267 = vpop.trf.xlu0
        %v268 = vpop.trf.xlu0
        %v269 = vpop.trf.xlu0
        %v270 = vpop.trf.xlu0
        %v271 = vpop.trf.xlu0
        %v272 = vpop.trf.xlu0
        %v273 = vpop.trf.xlu0
        %v274 = vpop.trf.xlu0
        %v275 = vpop.trf.xlu0
        %v276 = vpop.trf.xlu0
        %v277 = vpop.trf.xlu0
        %278 = vxpose.xlu0.b32.start [1/16] %v181, 128
        %279 = vxpose.xlu0.b32.cont [2/16] 0.0, 128
        %280 = vxpose.xlu0.b32.cont [3/16] 0.0, 128
        %281 = vxpose.xlu0.b32.cont [4/16] 0.0, 128
        %282 = vxpose.xlu0.b32.cont [5/16] 0.0, 128
        %283 = vxpose.xlu0.b32.cont [6/16] 0.0, 128
        %284 = vxpose.xlu0.b32.cont [7/16] 0.0, 128
        %285 = vxpose.xlu0.b32.cont [8/16] 0.0, 128
        %286 = vxpose.xlu0.b32.cont [9/16] 0.0, 128
        %287 = vxpose.xlu0.b32.cont [10/16] 0.0, 128
        %288 = vxpose.xlu0.b32.cont [11/16] 0.0, 128
        %289 = vxpose.xlu0.b32.cont [12/16] 0.0, 128
        %290 = vxpose.xlu0.b32.cont [13/16] 0.0, 128
        %291 = vxpose.xlu0.b32.cont [14/16] 0.0, 128
        %292 = vxpose.xlu0.b32.cont [15/16] 0.0, 128
        %293 = vxpose.xlu0.b32.end [16/16] 0.0, 128
        %v294 = vpop.trf.xlu0
        %v295 = vpop.trf.xlu0
        %v296 = vpop.trf.xlu0
        %v297 = vpop.trf.xlu0
        %v298 = vpop.trf.xlu0
        %v299 = vpop.trf.xlu0
        %v300 = vpop.trf.xlu0
        %v301 = vpop.trf.xlu0
        %v302 = vpop.trf.xlu0
        %v303 = vpop.trf.xlu0
        %v304 = vpop.trf.xlu0
        %v305 = vpop.trf.xlu0
        %v306 = vpop.trf.xlu0
        %v307 = vpop.trf.xlu0
        %v308 = vpop.trf.xlu0
        %v309 = vpop.trf.xlu0
        %vm310 = vcmask 57344
        %311 = vst.msk [vmem:[#allocation2] sm:$0x1] %vm310, -inf
        %312 = vst.msk [vmem:[#allocation2 + $0x18] sm:$0x1] %vm310, -inf
        %313 = vst.msk [vmem:[#allocation2 + $0x30] sm:$0x1] %vm310, -inf
        %314 = vst.msk [vmem:[#allocation2 + $0x48] sm:$0x1] %vm310, -inf
        %315 = vst.msk [vmem:[#allocation2 + $0x11] sm:$0x1] %vm310, -inf
        %316 = vst.msk [vmem:[#allocation2 + $0x29] sm:$0x1] %vm310, -inf
        %317 = vst.msk [vmem:[#allocation2 + $0x41] sm:$0x1] %vm310, -inf
        %318 = vst.msk [vmem:[#allocation2 + $0x59] sm:$0x1] %vm310, -inf
        %vm319 = vcmask 64512
        %320 = vst.msk [vmem:[#allocation2 + $0x1] sm:$0xff] %vm319, %v198
        %321 = vst.msk [vmem:[#allocation2 + $0x9] sm:$0xff] %vm319, %v199
        %322 = vst.msk [vmem:[#allocation2 + $0x19] sm:$0xff] %vm319, %v230
        %323 = vst.msk [vmem:[#allocation2 + $0x21] sm:$0xff] %vm319, %v231
        %324 = vst.msk [vmem:[#allocation2 + $0x31] sm:$0xff] %vm319, %v262
        %325 = vst.msk [vmem:[#allocation2 + $0x39] sm:$0xff] %vm319, %v263
        %326 = vst.msk [vmem:[#allocation2 + $0x49] sm:$0xff] %vm319, %v294
        %327 = vst.msk [vmem:[#allocation2 + $0x51] sm:$0xff] %vm319, %v295
        %v328 = vld [vmem:[#allocation2] ss:$2 sm:$0xff]
        %s329 = scalar_lea.vmem [#allocation2], 24
        %v330 = vld [vmem:[%s329] ss:$2 sm:$0xff]
        %s331 = scalar_lea.vmem [#allocation2], 48
        %v332 = vld [vmem:[%s331] ss:$2 sm:$0xff]
        %s333 = scalar_lea.vmem [#allocation2], 72
        %v334 = vld [vmem:[%s333] ss:$2 sm:$0xff]
        %s335 = scalar_lea.vmem [#allocation2], 1
        %v336 = vld [vmem:[%s335] ss:$2 sm:$0xff]
        %s337 = scalar_lea.vmem [#allocation2], 25
        %v338 = vld [vmem:[%s337] ss:$2 sm:$0xff]
        %s339 = scalar_lea.vmem [#allocation2], 49
        %v340 = vld [vmem:[%s339] ss:$2 sm:$0xff]
        %s341 = scalar_lea.vmem [#allocation2], 73
        %v342 = vld [vmem:[%s341] ss:$2 sm:$0xff]
        %v343 = vmax.f32 %v328, %v336
        %v344 = vmax.f32 %v330, %v338
        %v345 = vmax.f32 %v332, %v340
        %v346 = vmax.f32 %v334, %v342
        %s347 = scalar_lea.vmem [#allocation2], 2
        %v348 = vld [vmem:[%s347] ss:$2 sm:$0xff]
        %s349 = scalar_lea.vmem [#allocation2], 26
        %v350 = vld [vmem:[%s349] ss:$2 sm:$0xff]
        %s351 = scalar_lea.vmem [#allocation2], 50
        %v352 = vld [vmem:[%s351] ss:$2 sm:$0xff]
        %s353 = scalar_lea.vmem [#allocation2], 74
        %v354 = vld [vmem:[%s353] ss:$2 sm:$0xff]
        %v355 = vmax.f32 %v343, %v348
        %v356 = vmax.f32 %v344, %v350
        %v357 = vmax.f32 %v345, %v352
        %v358 = vmax.f32 %v346, %v354
        %359 = vxpose.xlu0.b32.start [1/16] %v355, 128
        %360 = vxpose.xlu0.b32.cont [2/16] 0.0, 128
        %361 = vxpose.xlu0.b32.cont [3/16] 0.0, 128
        %362 = vxpose.xlu0.b32.cont [4/16] 0.0, 128
        %363 = vxpose.xlu0.b32.cont [5/16] 0.0, 128
        %364 = vxpose.xlu0.b32.cont [6/16] 0.0, 128
        %365 = vxpose.xlu0.b32.cont [7/16] 0.0, 128
        %366 = vxpose.xlu0.b32.cont [8/16] 0.0, 128
        %367 = vxpose.xlu0.b32.cont [9/16] 0.0, 128
        %368 = vxpose.xlu0.b32.cont [10/16] 0.0, 128
        %369 = vxpose.xlu0.b32.cont [11/16] 0.0, 128
        %370 = vxpose.xlu0.b32.cont [12/16] 0.0, 128
        %371 = vxpose.xlu0.b32.cont [13/16] 0.0, 128
        %372 = vxpose.xlu0.b32.cont [14/16] 0.0, 128
        %373 = vxpose.xlu0.b32.cont [15/16] 0.0, 128
        %374 = vxpose.xlu0.b32.end [16/16] 0.0, 128
        %v375 = vpop.trf.xlu0
        %v376 = vpop.trf.xlu0
        %v377 = vpop.trf.xlu0
        %v378 = vpop.trf.xlu0
        %v379 = vpop.trf.xlu0
        %v380 = vpop.trf.xlu0
        %v381 = vpop.trf.xlu0
        %v382 = vpop.trf.xlu0
        %v383 = vpop.trf.xlu0
        %v384 = vpop.trf.xlu0
        %v385 = vpop.trf.xlu0
        %v386 = vpop.trf.xlu0
        %v387 = vpop.trf.xlu0
        %v388 = vpop.trf.xlu0
        %v389 = vpop.trf.xlu0
        %v390 = vpop.trf.xlu0
        %391 = vxpose.xlu0.b32.start [1/16] %v356, 128
        %392 = vxpose.xlu0.b32.cont [2/16] 0.0, 128
        %393 = vxpose.xlu0.b32.cont [3/16] 0.0, 128
        %394 = vxpose.xlu0.b32.cont [4/16] 0.0, 128
        %395 = vxpose.xlu0.b32.cont [5/16] 0.0, 128
        %396 = vxpose.xlu0.b32.cont [6/16] 0.0, 128
        %397 = vxpose.xlu0.b32.cont [7/16] 0.0, 128
        %398 = vxpose.xlu0.b32.cont [8/16] 0.0, 128
        %399 = vxpose.xlu0.b32.cont [9/16] 0.0, 128
        %400 = vxpose.xlu0.b32.cont [10/16] 0.0, 128
        %401 = vxpose.xlu0.b32.cont [11/16] 0.0, 128
        %402 = vxpose.xlu0.b32.cont [12/16] 0.0, 128
        %403 = vxpose.xlu0.b32.cont [13/16] 0.0, 128
        %404 = vxpose.xlu0.b32.cont [14/16] 0.0, 128
        %405 = vxpose.xlu0.b32.cont [15/16] 0.0, 128
        %406 = vxpose.xlu0.b32.end [16/16] 0.0, 128
        %v407 = vpop.trf.xlu0
        %v408 = vpop.trf.xlu0
        %v409 = vpop.trf.xlu0
        %v410 = vpop.trf.xlu0
        %v411 = vpop.trf.xlu0
        %v412 = vpop.trf.xlu0
        %v413 = vpop.trf.xlu0
        %v414 = vpop.trf.xlu0
        %v415 = vpop.trf.xlu0
        %v416 = vpop.trf.xlu0
        %v417 = vpop.trf.xlu0
        %v418 = vpop.trf.xlu0
        %v419 = vpop.trf.xlu0
        %v420 = vpop.trf.xlu0
        %v421 = vpop.trf.xlu0
        %v422 = vpop.trf.xlu0
        %423 = vxpose.xlu0.b32.start [1/16] %v357, 128
        %424 = vxpose.xlu0.b32.cont [2/16] 0.0, 128
        %425 = vxpose.xlu0.b32.cont [3/16] 0.0, 128
        %426 = vxpose.xlu0.b32.cont [4/16] 0.0, 128
        %427 = vxpose.xlu0.b32.cont [5/16] 0.0, 128
        %428 = vxpose.xlu0.b32.cont [6/16] 0.0, 128
        %429 = vxpose.xlu0.b32.cont [7/16] 0.0, 128
        %430 = vxpose.xlu0.b32.cont [8/16] 0.0, 128
        %431 = vxpose.xlu0.b32.cont [9/16] 0.0, 128
        %432 = vxpose.xlu0.b32.cont [10/16] 0.0, 128
        %433 = vxpose.xlu0.b32.cont [11/16] 0.0, 128
        %434 = vxpose.xlu0.b32.cont [12/16] 0.0, 128
        %435 = vxpose.xlu0.b32.cont [13/16] 0.0, 128
        %436 = vxpose.xlu0.b32.cont [14/16] 0.0, 128
        %437 = vxpose.xlu0.b32.cont [15/16] 0.0, 128
        %438 = vxpose.xlu0.b32.end [16/16] 0.0, 128
        %v439 = vpop.trf.xlu0
        %v440 = vpop.trf.xlu0
        %v441 = vpop.trf.xlu0
        %v442 = vpop.trf.xlu0
        %v443 = vpop.trf.xlu0
        %v444 = vpop.trf.xlu0
        %v445 = vpop.trf.xlu0
        %v446 = vpop.trf.xlu0
        %v447 = vpop.trf.xlu0
        %v448 = vpop.trf.xlu0
        %v449 = vpop.trf.xlu0
        %v450 = vpop.trf.xlu0
        %v451 = vpop.trf.xlu0
        %v452 = vpop.trf.xlu0
        %v453 = vpop.trf.xlu0
        %v454 = vpop.trf.xlu0
        %455 = vxpose.xlu0.b32.start [1/16] %v358, 128
        %456 = vxpose.xlu0.b32.cont [2/16] 0.0, 128
        %457 = vxpose.xlu0.b32.cont [3/16] 0.0, 128
        %458 = vxpose.xlu0.b32.cont [4/16] 0.0, 128
        %459 = vxpose.xlu0.b32.cont [5/16] 0.0, 128
        %460 = vxpose.xlu0.b32.cont [6/16] 0.0, 128
        %461 = vxpose.xlu0.b32.cont [7/16] 0.0, 128
        %462 = vxpose.xlu0.b32.cont [8/16] 0.0, 128
        %463 = vxpose.xlu0.b32.cont [9/16] 0.0, 128
        %464 = vxpose.xlu0.b32.cont [10/16] 0.0, 128
        %465 = vxpose.xlu0.b32.cont [11/16] 0.0, 128
        %466 = vxpose.xlu0.b32.cont [12/16] 0.0, 128
        %467 = vxpose.xlu0.b32.cont [13/16] 0.0, 128
        %468 = vxpose.xlu0.b32.cont [14/16] 0.0, 128
        %469 = vxpose.xlu0.b32.cont [15/16] 0.0, 128
        %470 = vxpose.xlu0.b32.end [16/16] 0.0, 128
        %v471 = vpop.trf.xlu0
        %v472 = vpop.trf.xlu0
        %v473 = vpop.trf.xlu0
        %v474 = vpop.trf.xlu0
        %v475 = vpop.trf.xlu0
        %v476 = vpop.trf.xlu0
        %v477 = vpop.trf.xlu0
        %v478 = vpop.trf.xlu0
        %v479 = vpop.trf.xlu0
        %v480 = vpop.trf.xlu0
        %v481 = vpop.trf.xlu0
        %v482 = vpop.trf.xlu0
        %v483 = vpop.trf.xlu0
        %v484 = vpop.trf.xlu0
        %v485 = vpop.trf.xlu0
        %v486 = vpop.trf.xlu0
        %487 = vst.msk [vmem:[%s135] sm:$0xff] %vm319, %v375
        %488 = vst.msk [vmem:[%s135 + $0x8] sm:$0xff] %vm319, %v407
        %489 = vst.msk [vmem:[%s135 + $0x10] sm:$0xff] %vm319, %v439
        %490 = vst.msk [vmem:[%s135 + $0x18] sm:$0xff] %vm319, %v471
        %s491 = sand.u32 %s52, 1
        %s492 = scalar_lea.sflag [#allocation5], %s491
        %s493 = sand.u32 %s52, 1
        %s494 = smul.addr %s493, 32
        %s495 = scalar_lea.vmem [#allocation6], %s494
        // Predicated region
        $region29: #{tpu_custom_call.1} parent=23 // pred_check
          %p496 = pneg %p62
        $region30: #{tpu_custom_call.1} parent=23 // pred_check_branch
          %498 = sbr.rel (%p496) target = $region32
        $region31: #{tpu_custom_call.1} parent=23 // pred_region
          %s499 = smul.u32 4, %s18
          %s501 = ssub.s32 512, 512
          %502 = vsyncadd %s492, %s501
          %s503 = smul.addr %s499, 128
          %s504 = scalar_lea.hbm %s1, %s503
          %s505 = sshll.u32 %s495, 4
          %s506 = int_to_ptr.vmem [resolvable:$true] %s505
          %511 = dma.vmem_to_hbm [thread:$0]  %s506, 512, %s504, %s492, 128, 128, 8
        $region32: #{tpu_custom_call.1} parent=23 // pred_fallthru
          _
      $region24: #{tpu_custom_call.1} parent=5 // pred_fallthru
        _
      %p512 = scmp.le.s32.totalorder 2, %s13
      // Predicated region
      $region33: #{tpu_custom_call.1} parent=5 // pred_check
        %p513 = pneg %p512
      $region34: #{tpu_custom_call.1} parent=5 // pred_check_branch
        %515 = sbr.rel (%p513) target = $region36
      $region35: #{tpu_custom_call.1} parent=5 // pred_region
        %s516 = ssub.s32 %s13, 2
        // Predicated region
        $region37: #{tpu_custom_call.1} parent=35 // pred_check
          %p517 = pneg %p68
        $region38: #{tpu_custom_call.1} parent=35 // pred_check_branch
          %519 = sbr.rel (%p517) target = $region40
        $region39: #{tpu_custom_call.1} parent=35 // pred_region
          %s520 = sand.u32 %s53, 1
          %s521 = scalar_lea.sflag [#allocation5], %s520
          %s522 = sand.u32 %s53, 1
          %s523 = smul.addr %s522, 32
          %s524 = scalar_lea.vmem [#allocation6], %s523
          %525 = dma.done %s521, 512
        $region40: #{tpu_custom_call.1} parent=35 // pred_fallthru
          _
      $region36: #{tpu_custom_call.1} parent=5 // pred_fallthru
        _
    $region6: #{tpu_custom_call.1} parent=1 // loop_footer
      %s17 = sadd.s32 1, %s13
    $region7: #{tpu_custom_call.1} parent=1 // loop_footer_branch
      %12 = sbr.rel target = $region3
    $region8: #{tpu_custom_call.1} parent=1 // loop_exit
      _
    %526 = vsyncpa [#allocation4], 1
    %s527 = scalar_lea.sflag [#allocation4], 1
    %528 = vsyncpa %s527, 1
    %529 = vsyncpa [#allocation5], 1
    %s530 = scalar_lea.sflag [#allocation5], 1
    %531 = vsyncpa %s530, 1

</llo_original>
